<compile_context>
chip_gen: v5e
topology: v5e:2x2
jax: 0.10.0
libtpu: 0.0.40
codegen_flags: <defaults>
</compile_context>

<pallas_src>
import functools

import jax
import jax.numpy as jnp
from jax import lax
from jax.experimental import pallas as pl
from jax.experimental.pallas import tpu as pltpu

KERNEL_SIZE = 7
PAD = 3
HALO = 128            # lane-aligned halo width used by the L >= 128 kernels


# --------------------------------------------------------------------------
# Kernels
# --------------------------------------------------------------------------
def _feat_pair(x):
    """Channel-wise mean / max features in f32 (reduction over axis=1)."""
    return (jnp.mean(x, axis=1, dtype=jnp.float32),
            jnp.max(x, axis=1).astype(jnp.float32))


def _conv_gate_store(w_ref, x_ref, o_ref, halo_feats, L, tile_start):
    """Shared body: 7-tap conv over [left | tile | right] features, sigmoid,
    then gate the native-dtype x block."""
    x = x_ref[...]                                   # (TN, C, TL), native dtype
    TN, _, TL = x.shape
    W = TL + 2 * HALO

    mean_c, max_c = _feat_pair(x)                    # (TN, TL) f32
    m_l, mx_l, m_r, mx_r = halo_feats                # (TN, HALO) f32 each

    # 128-aligned concatenation -> (TN, TL + 2*HALO) feature slabs.
    mean_ext = jnp.concatenate([m_l, mean_c, m_r], axis=1)
    max_ext = jnp.concatenate([mx_l, max_c, mx_r], axis=1)

    # Zero every column whose absolute sequence position falls outside [0, L):
    # this reproduces the conv's zero padding at both sequence ends and also
    # kills garbage read from partially out-of-bounds boundary blocks.
    pos = lax.broadcasted_iota(jnp.int32, (TN, W), 1) + (tile_start - HALO)
    valid = jnp.logical_and(pos >= 0, pos < L)
    mean_ext = jnp.where(valid, mean_ext, 0.0)
    max_ext = jnp.where(valid, max_ext, 0.0)

    # Conv1d(2 -> 1, k=7, padding=3): 7 statically shifted MACs on the VPU;
    # the shifted windows are static lane-offset slices of the extended slab
    # (lane rotates on the otherwise idle XLU) -- no VMEM scratch, no masked
    # partial stores.
    acc = jnp.full((TN, TL), w_ref[2 * KERNEL_SIZE], dtype=jnp.float32)
    for k in range(KERNEL_SIZE):
        s = HALO - PAD + k
        acc = (acc
               + w_ref[k] * mean_ext[:, s:s + TL]
               + w_ref[KERNEL_SIZE + k] * max_ext[:, s:s + TL])

    gate = jax.nn.sigmoid(acc)                       # (TN, TL) f32, EUP
    # Keep the big tensor in its native dtype; only the gate is cast down.
    o_ref[...] = x * gate[:, None, :].astype(x.dtype)


def _sam_kernel_tiled(w_ref, x_ref, xl_ref, xr_ref, o_ref, *, L):
    """L split into several 128-aligned tiles; xl/xr are 128-wide halo blocks
    of x supplying the +/-3 conv fringe across tile boundaries."""
    m_l, mx_l = _feat_pair(xl_ref[...])
    m_r, mx_r = _feat_pair(xr_ref[...])
    tile_start = pl.program_id(1) * x_ref.shape[2]
    _conv_gate_store(w_ref, x_ref, o_ref, (m_l, mx_l, m_r, mx_r), L, tile_start)


def _sam_kernel_single(w_ref, x_ref, o_ref, *, L):
    """Whole sequence in one tile (L >= 128): the conv halo is plain zeros."""
    z = jnp.zeros((x_ref.shape[0], HALO), jnp.float32)
    _conv_gate_store(w_ref, x_ref, o_ref, (z, z, z, z), L, 0)


def _sam_kernel_small(w_ref, x_ref, o_ref, pad_ref):
    """L < 128 (single lane group): tiny scratch-based variant.  Data here is
    a few KiB per step, so the scratch and its masked stores are irrelevant
    for bandwidth; it keeps this edge case on the most conservative lowering
    path (no lane-unaligned concatenation of sub-128 arrays)."""
    x = x_ref[...]
    TN, _, L = x.shape

    # Conv zero padding (re-written every step: see header note on why this is
    # not hoisted under pl.when(program_id == 0) -- per-core scratch on v7x).
    z = jnp.zeros((TN, 2, PAD), jnp.float32)
    pad_ref[:, :, pl.ds(0, PAD)] = z
    pad_ref[:, :, pl.ds(PAD + L, PAD)] = z

    pad_ref[:, pl.ds(0, 1), pl.ds(PAD, L)] = jnp.mean(
        x, axis=1, keepdims=True, dtype=jnp.float32)
    pad_ref[:, pl.ds(1, 1), pl.ds(PAD, L)] = jnp.max(
        x, axis=1, keepdims=True).astype(jnp.float32)

    acc = jnp.full((TN, 1, L), w_ref[2 * KERNEL_SIZE], dtype=jnp.float32)
    for k in range(KERNEL_SIZE):
        acc = (acc
               + w_ref[k] * pad_ref[:, pl.ds(0, 1), pl.ds(k, L)]
               + w_ref[KERNEL_SIZE + k] * pad_ref[:, pl.ds(1, 1), pl.ds(k, L)])

    gate = jax.nn.sigmoid(acc)                       # (TN, 1, L)
    o_ref[...] = x * gate.astype(x.dtype)


# --------------------------------------------------------------------------
# Wrapper / tiling
# --------------------------------------------------------------------------
def _round_up(v, m):
    return (v + m - 1) // m * m


def _sublanes(itemsize):
    return max(8, 32 // itemsize)                    # f32: 8, bf16: 16, i8: 32


def _phys_block_bytes(tn, c, tl, dtype):
    """Physical VMEM bytes of a (tn, c, tl) block after (sublane, lane) padding."""
    it = jnp.dtype(dtype).itemsize
    return tn * _round_up(c, _sublanes(it)) * _round_up(max(tl, 1), 128) * it


def _vmem_capacity_bytes():
    try:
        cap = getattr(pltpu.get_tpu_info(), "vmem_capacity_bytes", None)
        if cap:
            return int(cap)
    except Exception:
        pass
    return 64 << 20                                  # v7x per-core; safe floor


def _choose_tiles(n, c, L, dtype, block_bytes):
    """Pick (TN, TL): the largest tiles whose *physical* footprint stays under
    block_bytes, preferring a grid of >= 8 steps (two v7x cores x >= 4)."""
    it = jnp.dtype(dtype).itemsize
    c_pad = _round_up(c, _sublanes(it))
    if L < 128:
        tl = L
        n_l = 1
    else:
        max_cols = max(block_bytes // (c_pad * it), 128)
        tl = min(_round_up(L, 128), max(128, (max_cols // 128) * 128))
        n_l = pl.cdiv(L, tl)
    divisors = [d for d in range(1, n + 1) if n % d == 0]
    fitting = [d for d in divisors
               if _phys_block_bytes(d, c, tl, dtype) <= block_bytes] or [1]
    for min_steps in (8, 2, 1):
        pref = [d for d in fitting if (n // d) * n_l >= min_steps]
        if pref:
            return max(pref), tl
    return 1, tl


def sam_forward(x, w, b, *, block_bytes=None):
    """x: (N, C, L); w: (1, 2, 7) Conv1d(2, 1, 7) weight; b: (1,) bias."""
    N, C, L = x.shape
    dtype = x.dtype

    cap = _vmem_capacity_bytes()
    if block_bytes is None:
        # ~cap/16 per data block => in + out double buffers use ~cap/4.
        block_bytes = max(cap // 16, 1 << 20)
    vmem_limit = int(cap * 3 // 4)

    # [mean-channel taps (7), max-channel taps (7), bias] -> SMEM scalars.
    wb = jnp.concatenate([
        w[0, 0].astype(jnp.float32).reshape(KERNEL_SIZE),
        w[0, 1].astype(jnp.float32).reshape(KERNEL_SIZE),
        b.astype(jnp.float32).reshape(1),
    ])

    TN, TL = _choose_tiles(N, C, L, dtype, block_bytes)
    n_n = N // TN
    out_shape = jax.ShapeDtypeStruct((N, C, L), dtype)
    w_spec = pl.BlockSpec(memory_space=pltpu.MemorySpace.SMEM)
    # NOTE: with C < 8 the trailing (C, L) dims carry sublane padding in every
    # DMA; callers that control the layout can present x as an (N*C, L) slab
    # upstream to avoid that tax.  Not done here to keep the module interface.

    if L < 128:
        return pl.pallas_call(
            _sam_kernel_small,
            out_shape=out_shape,
            grid_spec=pltpu.PrefetchScalarGridSpec(
                num_scalar_prefetch=0,
                grid=(n_n,),
                in_specs=[w_spec,
                          pl.BlockSpec((TN, C, L), lambda n: (n, 0, 0))],
                out_specs=pl.BlockSpec((TN, C, L), lambda n: (n, 0, 0)),
                scratch_shapes=[pltpu.VMEM((TN, 2, L + 2 * PAD), jnp.float32)]),
            compiler_params=pltpu.CompilerParams(
                dimension_semantics=("parallel",),
                vmem_limit_bytes=vmem_limit),
        )(wb, x)

    n_l = pl.cdiv(L, TL)

    if n_l == 1:
        # Whole sequence in one 128-aligned tile; no halo DMAs needed.
        return pl.pallas_call(
            functools.partial(_sam_kernel_single, L=L),
            out_shape=out_shape,
            grid_spec=pltpu.PrefetchScalarGridSpec(
                num_scalar_prefetch=0,
                grid=(n_n,),
                in_specs=[w_spec,
                          pl.BlockSpec((TN, C, TL), lambda n: (n, 0, 0))],
                out_specs=pl.BlockSpec((TN, C, TL), lambda n: (n, 0, 0))),
            compiler_params=pltpu.CompilerParams(
                dimension_semantics=("parallel",),
                vmem_limit_bytes=vmem_limit),
        )(wb, x)

    # Several L tiles: two extra 128-wide halo blocks of x feed the +/-3 conv
    # fringe; their block indices are clamped at the sequence ends (the
    # clamped contents are masked out inside the kernel).
    bpt = TL // HALO
    n_halo_blocks = pl.cdiv(L, HALO)
    left_map = lambda n, l: (n, 0, jnp.maximum(l * bpt - 1, 0))
    right_map = lambda n, l: (n, 0, jnp.minimum((l + 1) * bpt, n_halo_blocks - 1))

    return pl.pallas_call(
        functools.partial(_sam_kernel_tiled, L=L),
        out_shape=out_shape,
        grid_spec=pltpu.PrefetchScalarGridSpec(
            num_scalar_prefetch=0,
            grid=(n_n, n_l),
            in_specs=[w_spec,
                      pl.BlockSpec((TN, C, TL), lambda n, l: (n, 0, l)),
                      pl.BlockSpec((TN, C, HALO), left_map),
                      pl.BlockSpec((TN, C, HALO), right_map)],
            out_specs=pl.BlockSpec((TN, C, TL), lambda n, l: (n, 0, l))),
        compiler_params=pltpu.CompilerParams(
            dimension_semantics=("parallel", "parallel"),
            vmem_limit_bytes=vmem_limit),
    )(wb, x, x, x)


# --------------------------------------------------------------------------
# Pure-JAX reference and self-test
# --------------------------------------------------------------------------
def sam_reference(x, w, b):
    """Pure-JAX reference mirroring the PyTorch module."""
    x1 = jnp.mean(x, axis=1, keepdims=True)
    x2 = jnp.max(x, axis=1, keepdims=True)
    feats = jnp.concatenate([x1, x2], axis=1)        # (N, 2, L)
    conv = lax.conv_general_dilated(
        feats, w, window_strides=(1,), padding=[(PAD, PAD)],
        dimension_numbers=("NCH", "OIH", "NCH")) + b.reshape(1, 1, 1)
    return x * jax.nn.sigmoid(conv)


if __name__ == "__main__":
    key = jax.random.PRNGKey(0)

    # (N, C, L, block_bytes) -- block_bytes=None lets the kernel pick; a small
    # forced value exercises the multi-tile halo path on tiny data.
    cases = [
        (2, 4, 16, None),      # L < 128: single lane-group path
        (4, 4, 512, 4096),     # forced 128-wide L tiles: halo blocks in play
        (2, 6, 300, 4096),     # ragged L: partial tail tile + halo clamping
        (2, 4, 512, None),     # default tiling: single 128-aligned L tile
    ]

    for i, (N, C, L, bb) in enumerate(cases):
        kx, kw, kb, key = jax.random.split(key, 4)
        x = jax.random.normal(kx, (N, C, L), dtype=jnp.float32)
        w = jax.random.normal(kw, (1, 2, KERNEL_SIZE), dtype=jnp.float32) * 0.2
        b = jax.random.normal(kb, (1,), dtype=jnp.float32) * 0.1

        out = jax.block_until_ready(sam_forward(x, w, b, block_bytes=bb))
        ref = sam_reference(x, w, b)

        assert out.shape == (N, C, L), f"case {i}: bad shape {out.shape}"
        err = jnp.max(jnp.abs(out - ref))
        assert jnp.allclose(out, ref, atol=1e-4, rtol=1e-4), (
            f"case {i}: max abs err = {err}")

    print("KERNEL_OK")
</pallas_src>

<mosaic_0001>
module attributes {stable_mosaic.version = 11 : i64} {
  func.func @_sam_kernel_small(%arg0: i32, %arg1: memref<15xf32, #tpu.memory_space<smem>>, %arg2: memref<1x4x16xf32, #tpu.memory_space<vmem>>, %arg3: memref<1x4x16xf32, #tpu.memory_space<vmem>>, %arg4: memref<1x2x22xf32, #tpu.memory_space<vmem>>) attributes {dimension_semantics = [#tpu.dimension_semantics<parallel>], iteration_bounds = array<i64: 2>, scalar_prefetch = 0 : i64, scratch_operands = 1 : i64, tpu.core_type = #tpu.core_type<tc>, window_params = [{transform_indices = @transform_0, window_bounds = array<i64: 15>}, {transform_indices = @transform_1, window_bounds = array<i64: 1, 4, 16>}, {transform_indices = @transform_2, window_bounds = array<i64: 1, 4, 16>}]} {
    %c0 = arith.constant 0 : index
    %c0_0 = arith.constant 0 : index
    %c0_1 = arith.constant 0 : index
    %0 = vector.load %arg2[%c0, %c0_0, %c0_1] : memref<1x4x16xf32, #tpu.memory_space<vmem>>, vector<1x4x16xf32>
    %cst = arith.constant 0.000000e+00 : f32
    %1 = vector.broadcast %cst : f32 to vector<1x2x3xf32>
    %c0_2 = arith.constant 0 : index
    %c0_3 = arith.constant 0 : index
    %c0_4 = arith.constant 0 : index
    %2 = vector.load %arg4[%c0_2, %c0_3, %c0_4] : memref<1x2x22xf32, #tpu.memory_space<vmem>>, vector<1x2x3xf32>
    tpu.vector_store %arg4[%c0_2, %c0_3, %c0_4], %1 {strides = array<i32>} : memref<1x2x22xf32, #tpu.memory_space<vmem>>, vector<1x2x3xf32>,
    %c0_5 = arith.constant 0 : index
    %c0_6 = arith.constant 0 : index
    %c19 = arith.constant 19 : index
    %3 = vector.load %arg4[%c0_5, %c0_6, %c19] : memref<1x2x22xf32, #tpu.memory_space<vmem>>, vector<1x2x3xf32>
    tpu.vector_store %arg4[%c0_5, %c0_6, %c19], %1 {strides = array<i32>} : memref<1x2x22xf32, #tpu.memory_space<vmem>>, vector<1x2x3xf32>,
    %cst_7 = arith.constant dense<0.000000e+00> : vector<1x16xf32>
    %4 = vector.multi_reduction <add>, %0, %cst_7 [1] : vector<1x4x16xf32> to vector<1x16xf32>
    %5 = vector.shape_cast %4 : vector<1x16xf32> to vector<1x1x16xf32>
    %cst_8 = arith.constant 4.000000e+00 : f32
    %6 = vector.broadcast %cst_8 : f32 to vector<1x1x16xf32>
    %7 = arith.divf %5, %6 : vector<1x1x16xf32>
    %c0_9 = arith.constant 0 : index
    %c0_10 = arith.constant 0 : index
    %c3 = arith.constant 3 : index
    %8 = vector.load %arg4[%c0_9, %c0_10, %c3] : memref<1x2x22xf32, #tpu.memory_space<vmem>>, vector<1x1x16xf32>
    tpu.vector_store %arg4[%c0_9, %c0_10, %c3], %7 {strides = array<i32>} : memref<1x2x22xf32, #tpu.memory_space<vmem>>, vector<1x1x16xf32>,
    %cst_11 = arith.constant dense<0xFF800000> : vector<1x16xf32>
    %9 = vector.multi_reduction <maximumf>, %0, %cst_11 [1] : vector<1x4x16xf32> to vector<1x16xf32>
    %10 = vector.shape_cast %9 : vector<1x16xf32> to vector<1x1x16xf32>
    %c0_12 = arith.constant 0 : index
    %c1 = arith.constant 1 : index
    %c3_13 = arith.constant 3 : index
    %11 = vector.load %arg4[%c0_12, %c1, %c3_13] : memref<1x2x22xf32, #tpu.memory_space<vmem>>, vector<1x1x16xf32>
    tpu.vector_store %arg4[%c0_12, %c1, %c3_13], %10 {strides = array<i32>} : memref<1x2x22xf32, #tpu.memory_space<vmem>>, vector<1x1x16xf32>,
    %c14 = arith.constant 14 : index
    %12 = memref.load %arg1[%c14] : memref<15xf32, #tpu.memory_space<smem>>
    %13 = vector.broadcast %12 : f32 to vector<1x1x16xf32>
    %c0_14 = arith.constant 0 : index
    %14 = memref.load %arg1[%c0_14] : memref<15xf32, #tpu.memory_space<smem>>
    %c0_15 = arith.constant 0 : index
    %c0_16 = arith.constant 0 : index
    %c0_17 = arith.constant 0 : index
    %15 = vector.load %arg4[%c0_15, %c0_16, %c0_17] : memref<1x2x22xf32, #tpu.memory_space<vmem>>, vector<1x1x16xf32>
    %16 = vector.broadcast %14 : f32 to vector<1x1x16xf32>
    %17 = arith.mulf %16, %15 : vector<1x1x16xf32>
    %18 = arith.addf %13, %17 : vector<1x1x16xf32>
    %c7 = arith.constant 7 : index
    %19 = memref.load %arg1[%c7] : memref<15xf32, #tpu.memory_space<smem>>
    %c0_18 = arith.constant 0 : index
    %c1_19 = arith.constant 1 : index
    %c0_20 = arith.constant 0 : index
    %20 = vector.load %arg4[%c0_18, %c1_19, %c0_20] : memref<1x2x22xf32, #tpu.memory_space<vmem>>, vector<1x1x16xf32>
    %21 = vector.broadcast %19 : f32 to vector<1x1x16xf32>
    %22 = arith.mulf %21, %20 : vector<1x1x16xf32>
    %23 = arith.addf %18, %22 : vector<1x1x16xf32>
    %c1_21 = arith.constant 1 : index
    %24 = memref.load %arg1[%c1_21] : memref<15xf32, #tpu.memory_space<smem>>
    %c0_22 = arith.constant 0 : index
    %c0_23 = arith.constant 0 : index
    %c1_24 = arith.constant 1 : index
    %25 = vector.load %arg4[%c0_22, %c0_23, %c1_24] : memref<1x2x22xf32, #tpu.memory_space<vmem>>, vector<1x1x16xf32>
    %26 = vector.broadcast %24 : f32 to vector<1x1x16xf32>
    %27 = arith.mulf %26, %25 : vector<1x1x16xf32>
    %28 = arith.addf %23, %27 : vector<1x1x16xf32>
    %c8 = arith.constant 8 : index
    %29 = memref.load %arg1[%c8] : memref<15xf32, #tpu.memory_space<smem>>
    %c0_25 = arith.constant 0 : index
    %c1_26 = arith.constant 1 : index
    %c1_27 = arith.constant 1 : index
    %30 = vector.load %arg4[%c0_25, %c1_26, %c1_27] : memref<1x2x22xf32, #tpu.memory_space<vmem>>, vector<1x1x16xf32>
    %31 = vector.broadcast %29 : f32 to vector<1x1x16xf32>
    %32 = arith.mulf %31, %30 : vector<1x1x16xf32>
    %33 = arith.addf %28, %32 : vector<1x1x16xf32>
    %c2 = arith.constant 2 : index
    %34 = memref.load %arg1[%c2] : memref<15xf32, #tpu.memory_space<smem>>
    %c0_28 = arith.constant 0 : index
    %c0_29 = arith.constant 0 : index
    %c2_30 = arith.constant 2 : index
    %35 = vector.load %arg4[%c0_28, %c0_29, %c2_30] : memref<1x2x22xf32, #tpu.memory_space<vmem>>, vector<1x1x16xf32>
    %36 = vector.broadcast %34 : f32 to vector<1x1x16xf32>
    %37 = arith.mulf %36, %35 : vector<1x1x16xf32>
    %38 = arith.addf %33, %37 : vector<1x1x16xf32>
    %c9 = arith.constant 9 : index
    %39 = memref.load %arg1[%c9] : memref<15xf32, #tpu.memory_space<smem>>
    %c0_31 = arith.constant 0 : index
    %c1_32 = arith.constant 1 : index
    %c2_33 = arith.constant 2 : index
    %40 = vector.load %arg4[%c0_31, %c1_32, %c2_33] : memref<1x2x22xf32, #tpu.memory_space<vmem>>, vector<1x1x16xf32>
    %41 = vector.broadcast %39 : f32 to vector<1x1x16xf32>
    %42 = arith.mulf %41, %40 : vector<1x1x16xf32>
    %43 = arith.addf %38, %42 : vector<1x1x16xf32>
    %c3_34 = arith.constant 3 : index
    %44 = memref.load %arg1[%c3_34] : memref<15xf32, #tpu.memory_space<smem>>
    %c0_35 = arith.constant 0 : index
    %c0_36 = arith.constant 0 : index
    %c3_37 = arith.constant 3 : index
    %45 = vector.load %arg4[%c0_35, %c0_36, %c3_37] : memref<1x2x22xf32, #tpu.memory_space<vmem>>, vector<1x1x16xf32>
    %46 = vector.broadcast %44 : f32 to vector<1x1x16xf32>
    %47 = arith.mulf %46, %45 : vector<1x1x16xf32>
    %48 = arith.addf %43, %47 : vector<1x1x16xf32>
    %c10 = arith.constant 10 : index
    %49 = memref.load %arg1[%c10] : memref<15xf32, #tpu.memory_space<smem>>
    %c0_38 = arith.constant 0 : index
    %c1_39 = arith.constant 1 : index
    %c3_40 = arith.constant 3 : index
    %50 = vector.load %arg4[%c0_38, %c1_39, %c3_40] : memref<1x2x22xf32, #tpu.memory_space<vmem>>, vector<1x1x16xf32>
    %51 = vector.broadcast %49 : f32 to vector<1x1x16xf32>
    %52 = arith.mulf %51, %50 : vector<1x1x16xf32>
    %53 = arith.addf %48, %52 : vector<1x1x16xf32>
    %c4 = arith.constant 4 : index
    %54 = memref.load %arg1[%c4] : memref<15xf32, #tpu.memory_space<smem>>
    %c0_41 = arith.constant 0 : index
    %c0_42 = arith.constant 0 : index
    %c4_43 = arith.constant 4 : index
    %55 = vector.load %arg4[%c0_41, %c0_42, %c4_43] : memref<1x2x22xf32, #tpu.memory_space<vmem>>, vector<1x1x16xf32>
    %56 = vector.broadcast %54 : f32 to vector<1x1x16xf32>
    %57 = arith.mulf %56, %55 : vector<1x1x16xf32>
    %58 = arith.addf %53, %57 : vector<1x1x16xf32>
    %c11 = arith.constant 11 : index
    %59 = memref.load %arg1[%c11] : memref<15xf32, #tpu.memory_space<smem>>
    %c0_44 = arith.constant 0 : index
    %c1_45 = arith.constant 1 : index
    %c4_46 = arith.constant 4 : index
    %60 = vector.load %arg4[%c0_44, %c1_45, %c4_46] : memref<1x2x22xf32, #tpu.memory_space<vmem>>, vector<1x1x16xf32>
    %61 = vector.broadcast %59 : f32 to vector<1x1x16xf32>
    %62 = arith.mulf %61, %60 : vector<1x1x16xf32>
    %63 = arith.addf %58, %62 : vector<1x1x16xf32>
    %c5 = arith.constant 5 : index
    %64 = memref.load %arg1[%c5] : memref<15xf32, #tpu.memory_space<smem>>
    %c0_47 = arith.constant 0 : index
    %c0_48 = arith.constant 0 : index
    %c5_49 = arith.constant 5 : index
    %65 = vector.load %arg4[%c0_47, %c0_48, %c5_49] : memref<1x2x22xf32, #tpu.memory_space<vmem>>, vector<1x1x16xf32>
    %66 = vector.broadcast %64 : f32 to vector<1x1x16xf32>
    %67 = arith.mulf %66, %65 : vector<1x1x16xf32>
    %68 = arith.addf %63, %67 : vector<1x1x16xf32>
    %c12 = arith.constant 12 : index
    %69 = memref.load %arg1[%c12] : memref<15xf32, #tpu.memory_space<smem>>
    %c0_50 = arith.constant 0 : index
    %c1_51 = arith.constant 1 : index
    %c5_52 = arith.constant 5 : index
    %70 = vector.load %arg4[%c0_50, %c1_51, %c5_52] : memref<1x2x22xf32, #tpu.memory_space<vmem>>, vector<1x1x16xf32>
    %71 = vector.broadcast %69 : f32 to vector<1x1x16xf32>
    %72 = arith.mulf %71, %70 : vector<1x1x16xf32>
    %73 = arith.addf %68, %72 : vector<1x1x16xf32>
    %c6 = arith.constant 6 : index
    %74 = memref.load %arg1[%c6] : memref<15xf32, #tpu.memory_space<smem>>
    %c0_53 = arith.constant 0 : index
    %c0_54 = arith.constant 0 : index
    %c6_55 = arith.constant 6 : index
    %75 = vector.load %arg4[%c0_53, %c0_54, %c6_55] : memref<1x2x22xf32, #tpu.memory_space<vmem>>, vector<1x1x16xf32>
    %76 = vector.broadcast %74 : f32 to vector<1x1x16xf32>
    %77 = arith.mulf %76, %75 : vector<1x1x16xf32>
    %78 = arith.addf %73, %77 : vector<1x1x16xf32>
    %c13 = arith.constant 13 : index
    %79 = memref.load %arg1[%c13] : memref<15xf32, #tpu.memory_space<smem>>
    %c0_56 = arith.constant 0 : index
    %c1_57 = arith.constant 1 : index
    %c6_58 = arith.constant 6 : index
    %80 = vector.load %arg4[%c0_56, %c1_57, %c6_58] : memref<1x2x22xf32, #tpu.memory_space<vmem>>, vector<1x1x16xf32>
    %81 = vector.broadcast %79 : f32 to vector<1x1x16xf32>
    %82 = arith.mulf %81, %80 : vector<1x1x16xf32>
    %83 = arith.addf %78, %82 : vector<1x1x16xf32>
    %84 = arith.negf %83 : vector<1x1x16xf32>
    %85 = math.exp %84 : vector<1x1x16xf32>
    %cst_59 = arith.constant 1.000000e+00 : f32
    %86 = vector.broadcast %cst_59 : f32 to vector<1x1x16xf32>
    %87 = arith.addf %86, %85 : vector<1x1x16xf32>
    %88 = arith.divf %86, %87 : vector<1x1x16xf32>
    %89 = vector.broadcast %88 : vector<1x1x16xf32> to vector<1x4x16xf32>
    %90 = arith.mulf %0, %89 : vector<1x4x16xf32>
    %c0_60 = arith.constant 0 : index
    %c0_61 = arith.constant 0 : index
    %c0_62 = arith.constant 0 : index
    %91 = vector.load %arg3[%c0_60, %c0_61, %c0_62] : memref<1x4x16xf32, #tpu.memory_space<vmem>>, vector<1x4x16xf32>
    tpu.vector_store %arg3[%c0_60, %c0_61, %c0_62], %90 {strides = array<i32>} : memref<1x4x16xf32, #tpu.memory_space<vmem>>, vector<1x4x16xf32>,
    return
  }
  func.func @transform_0(%arg0: i32) -> i32 {
    %c0_i32 = arith.constant 0 : i32
    %c0_i32_0 = arith.constant 0 : i32
    return %c0_i32 : i32
  }
  func.func @transform_1(%arg0: i32) -> (i32, i32, i32) {
    %c0_i32 = arith.constant 0 : i32
    %c0_i32_0 = arith.constant 0 : i32
    %c0_i32_1 = arith.constant 0 : i32
    return %arg0, %c0_i32, %c0_i32_0 : i32, i32, i32
  }
  func.func @transform_2(%arg0: i32) -> (i32, i32, i32) {
    %c0_i32 = arith.constant 0 : i32
    %c0_i32_0 = arith.constant 0 : i32
    %c0_i32_1 = arith.constant 0 : i32
    return %arg0, %c0_i32, %c0_i32_0 : i32, i32, i32
  }
}

</mosaic_0001>

<llo_original>
// kernel: tpu_custom_call.1
$region0: #{tpu_custom_call.1}
  #allocation0 [shape = 'u32[]', space=smem, size = 0x4, offset = 0x4, fixed_abs, tag = 'smem constant byte address 0x4 - core index']
  #allocation1 [shape = 'u32[72,128]{1,0:T(1,128)}', space=vmem, size = 0x9000, scoped, tag = 'internal scratch']
  #allocation2 [shape = 'f32[1,2,22]{2,1,0:T(2,128)}', space=vmem, size = 0x400, scoped, tag = 'scratch operand']
  %s0 = inlined_call_operand.hbm [shape: f32[15], index: 0, kind: input, shape index: {}]
  %s1 = inlined_call_operand.hbm [shape: f32[2,4,16], index: 1, kind: input, shape index: {}]
  %s2 = inlined_call_operand.hbm [shape: f32[2,4,16], index: 2, kind: output, shape index: {}]
  %s3 = sld [smem:[#allocation0]]
  $region49: #{tpu_custom_call.1} parent=0
    _
  %s5 = ssub.s32 1, %s3
  %s6 = scalar_select 0, %s5, %s3
  $region1: #{tpu_custom_call.1} parent=0
    #allocation3 [shape = 'u8[512]{0}', space=smem, size = 0x200, scoped, tag = 'input window, operand 0, single buffered']
    #allocation4 [shape = 's32[2]{0}', space=sflag, size = 0x8, scoped, tag = 'scoped memory for tpu_custom_call.1']
    #allocation5 [shape = 's32[2]{0}', space=sflag, size = 0x8, scoped, tag = 'scoped memory for tpu_custom_call.1']
    #allocation6 [shape = 's32[2]{0}', space=sflag, size = 0x8, scoped, tag = 'scoped memory for tpu_custom_call.1']
    #allocation7 [shape = 'u8[4096]{0}', space=vmem, size = 0x1000, scoped, tag = 'input window, operand 1']
    #allocation8 [shape = 'u8[4096]{0}', space=vmem, size = 0x1000, scoped, tag = 'output window, operand 0']
    %7 = vsyncpa [#allocation6], 0
    %8 = vsyncpa [#allocation4], 0
    %s9 = scalar_lea.sflag [#allocation4], 1
    %10 = vsyncpa %s9, 0
    %11 = vsyncpa [#allocation5], 0
    %s12 = scalar_lea.sflag [#allocation5], 1
    %13 = vsyncpa %s12, 0
    loop: start=0, step=1, limit=4
    $region2: #{tpu_custom_call.1} parent=1 // loop_pre_header
      _
    $region3: #{tpu_custom_call.1} parent=1 // loop_header
      %s15 = sphi 0, %s19
      %p16 = scmp.ge.s32.totalorder %s15, 4
      %s23 = sphi 0, %s23
      %s25 = sphi 0, %s23
      %s26 = sphi 0, %s25
      %s40 = sphi 0, %s26
      %s46 = sphi 0, %s48
      %s49 = sphi 0, %s46
      %s50 = sphi 0, %s49
      %s66 = sphi 0, %s50
      %s72 = sphi 0, %s74
      %s75 = sphi 0, %s72
      %s76 = sphi 0, %s75
      %s92 = sphi 0, %s76
    $region4: #{tpu_custom_call.1} parent=1 // loop_header_branch
      %18 = sbr.rel (%p16) target = $region8
    $region5: #{tpu_custom_call.1} parent=1 // loop_body
      %s20 = ssub.s32 %s15, 1
      %s21 = ssub.s32 %s15, 2
      %s22 = sadd.s32 %s15, 1
      %s24 = sadd.s32 %s23, 1
      %p27 = scmp.eq.s32.totalorder %s15, 1
      %p28 = scmp.ne.s32.totalorder %s23, %s25
      %p29 = scmp.eq.s32.totalorder %s15, 0
      %p30 = por %p28, %p29
      %p31 = scmp.ne.s32.totalorder %s23, %s25
      %p32 = scmp.eq.s32.totalorder %s20, 1
      %p33 = por %p31, %p32
      %p34 = scmp.ne.s32.totalorder %s25, %s26
      %p35 = scmp.eq.s32.totalorder %s20, 0
      %p36 = por %p34, %p35
      %p37 = scmp.ne.s32.totalorder %s25, %s26
      %p38 = scmp.eq.s32.totalorder %s21, 1
      %p39 = por %p37, %p38
      %p41 = scmp.ne.s32.totalorder %s26, %s40
      %p42 = scmp.eq.s32.totalorder %s21, 0
      %p43 = por %p41, %p42
      %s44 = ssub.s32 %s15, %s22
      %p45 = scmp.eq.s32.totalorder %s44, 0
      %s47 = sadd.s32 %s46, 1
      %s48 = scalar_select %p45, %s46, %s47
      %p51 = pneg %p45
      %p52 = scmp.eq.s32.totalorder %s15, 1
      %p53 = por %p51, %p52
      %p54 = scmp.ne.s32.totalorder %s46, %s49
      %p55 = scmp.eq.s32.totalorder %s15, 0
      %p56 = por %p54, %p55
      %p57 = scmp.ne.s32.totalorder %s46, %s49
      %p58 = scmp.eq.s32.totalorder %s20, 1
      %p59 = por %p57, %p58
      %p60 = scmp.ne.s32.totalorder %s49, %s50
      %p61 = scmp.eq.s32.totalorder %s20, 0
      %p62 = por %p60, %p61
      %p63 = scmp.ne.s32.totalorder %s49, %s50
      %p64 = scmp.eq.s32.totalorder %s21, 1
      %p65 = por %p63, %p64
      %p67 = scmp.ne.s32.totalorder %s50, %s66
      %p68 = scmp.eq.s32.totalorder %s21, 0
      %p69 = por %p67, %p68
      %s70 = ssub.s32 %s15, %s22
      %p71 = scmp.eq.s32.totalorder %s70, 0
      %s73 = sadd.s32 %s72, 1
      %s74 = scalar_select %p71, %s72, %s73
      %p77 = pneg %p71
      %p78 = scmp.eq.s32.totalorder %s15, 1
      %p79 = por %p77, %p78
      %p80 = scmp.ne.s32.totalorder %s72, %s75
      %p81 = scmp.eq.s32.totalorder %s15, 0
      %p82 = por %p80, %p81
      %p83 = scmp.ne.s32.totalorder %s72, %s75
      %p84 = scmp.eq.s32.totalorder %s20, 1
      %p85 = por %p83, %p84
      %p86 = scmp.ne.s32.totalorder %s75, %s76
      %p87 = scmp.eq.s32.totalorder %s20, 0
      %p88 = por %p86, %p87
      %p89 = scmp.ne.s32.totalorder %s75, %s76
      %p90 = scmp.eq.s32.totalorder %s21, 1
      %p91 = por %p89, %p90
      %p93 = scmp.ne.s32.totalorder %s76, %s92
      %p94 = scmp.eq.s32.totalorder %s21, 0
      %p95 = por %p93, %p94
      %p96 = scmp.le.s32.totalorder 1, %s15
      %p97 = scmp.lt.s32.totalorder %s15, 3
      %p98 = pnand %p96, %p97
      %p99 = pneg %p98
      // Predicated region
      $region9: #{tpu_custom_call.1} parent=5 // pred_check
        _
      $region10: #{tpu_custom_call.1} parent=5 // pred_check_branch
        %101 = sbr.rel (%p98) target = $region12
      $region11: #{tpu_custom_call.1} parent=5 // pred_region
        %s102 = ssub.s32 %s15, 1
        // Predicated region
        $region13: #{tpu_custom_call.1} parent=11 // pred_check
          %p103 = pneg %p36
        $region14: #{tpu_custom_call.1} parent=11 // pred_check_branch
          %105 = sbr.rel (%p103) target = $region16
        $region15: #{tpu_custom_call.1} parent=11 // pred_region
          %107 = vsyncadd [#allocation6], 0
          %s109 = sshll.u32 %s0, 4
          %s110 = int_to_ptr.hbm [resolvable:$true] %s109
          %112 = dma.hbm_to_smem %s110, 16, [#allocation3], [#allocation6]
        $region16: #{tpu_custom_call.1} parent=11 // pred_fallthru
          _
      $region12: #{tpu_custom_call.1} parent=5 // pred_fallthru
        _
      %p113 = scmp.lt.s32.totalorder %s15, 2
      // Predicated region
      $region17: #{tpu_custom_call.1} parent=5 // pred_check
        %p114 = pneg %p113
      $region18: #{tpu_custom_call.1} parent=5 // pred_check_branch
        %116 = sbr.rel (%p114) target = $region20
      $region19: #{tpu_custom_call.1} parent=5 // pred_region
        // Predicated region
        $region21: #{tpu_custom_call.1} parent=19 // pred_check
          %p117 = pneg %p56
        $region22: #{tpu_custom_call.1} parent=19 // pred_check_branch
          %119 = sbr.rel (%p117) target = $region24
        $region23: #{tpu_custom_call.1} parent=19 // pred_region
          %s120 = sand.u32 %s46, 1
          %s121 = scalar_lea.sflag [#allocation4], %s120
          %s122 = sand.u32 %s46, 1
          %s123 = smul.addr %s122, 4
          %s124 = scalar_lea.vmem [#allocation7], %s123
          %126 = vsyncadd %s121, 0
          %s127 = smul.addr %s15, 4
          %s128 = scalar_lea.hbm %s1, %s127
          %s130 = sshll.u32 %s128, 4
          %s131 = int_to_ptr.hbm [resolvable:$true] %s130
          %s132 = sshll.u32 %s124, 4
          %s133 = int_to_ptr.vmem [resolvable:$true] %s132
          %135 = dma.hbm_to_vmem [thread:$0]  %s131, 64, %s133, %s121
        $region24: #{tpu_custom_call.1} parent=19 // pred_fallthru
          _
      $region20: #{tpu_custom_call.1} parent=5 // pred_fallthru
        _
      %p136 = scmp.le.s32.totalorder 1, %s15
      %p137 = scmp.lt.s32.totalorder %s15, 3
      %p138 = pnand %p136, %p137
      %p139 = pneg %p138
      // Predicated region
      $region25: #{tpu_custom_call.1} parent=5 // pred_check
        _
      $region26: #{tpu_custom_call.1} parent=5 // pred_check_branch
        %141 = sbr.rel (%p138) target = $region28
      $region27: #{tpu_custom_call.1} parent=5 // pred_region
        %s142 = ssub.s32 %s15, 1
        // Predicated region
        $region29: #{tpu_custom_call.1} parent=27 // pred_check
          %p143 = pneg %p36
        $region30: #{tpu_custom_call.1} parent=27 // pred_check_branch
          %145 = sbr.rel (%p143) target = $region32
        $region31: #{tpu_custom_call.1} parent=27 // pred_region
          %147 = dma.done [#allocation6], 16
        $region32: #{tpu_custom_call.1} parent=27 // pred_fallthru
          _
        %s148 = sand.u32 %s49, 1
        %s149 = scalar_lea.sflag [#allocation4], %s148
        %s150 = sand.u32 %s49, 1
        %s151 = smul.addr %s150, 4
        %s152 = scalar_lea.vmem [#allocation7], %s151
        // Predicated region
        $region33: #{tpu_custom_call.1} parent=27 // pred_check
          %p153 = pneg %p62
        $region34: #{tpu_custom_call.1} parent=27 // pred_check_branch
          %155 = sbr.rel (%p153) target = $region36
        $region35: #{tpu_custom_call.1} parent=27 // pred_region
          %157 = dma.done %s149, 64
        $region36: #{tpu_custom_call.1} parent=27 // pred_fallthru
          _
        %158 = sfence
        %p159 = pneg %p36
        %p160 = pneg %p33
        %s161 = sand.u32 %s49, 1
        %s162 = scalar_lea.sflag [#allocation4], %s161
        %s163 = sand.u32 %s49, 1
        %s164 = smul.addr %s163, 4
        %s165 = scalar_lea.vmem [#allocation7], %s164
        %p166 = pneg %p62
        %p167 = pneg %p59
        %p168 = pneg %p88
        %p169 = pneg %p85
        %s170 = sand.u32 %s75, 1
        %s171 = scalar_lea.sflag [#allocation5], %s170
        %s172 = sand.u32 %s75, 1
        %s173 = smul.addr %s172, 4
        %s174 = scalar_lea.vmem [#allocation8], %s173
        %v175 = vld [vmem:[%s152] sm:$0xf]
        %vm176 = vcmask 17408
        %177 = vst.msk [vmem:[#allocation2] sm:$0x3] %vm176, 0.0
        %vm178 = vcmask 173208
        %179 = vst.msk [vmem:[#allocation2] sm:$0x3] %vm178, 0.0
        %vm180 = vcmask 125952
        %v181 = vsel %vm180, %v175, 0.0
        %v182 = vrot.slane %v181, 4
        %v183 = vadd.f32 %v181, %v182
        %v184 = vrot.slane %v183, 2
        %v185 = vadd.f32 %v183, %v184
        %v186 = vrot.slane %v185, 1
        %v187 = vadd.f32 %v185, %v186
        %v188 = vrcp.pop 4.0
        %v189 = vmul.f32 4.0, %v188
        %v190 = vsub.f32 1.0, %v189
        %v191 = vmul.f32 %v188, %v190
        %v192 = vadd.f32 %v188, %v191
        %vm193 = vweird.f32 %v188
        %v194 = vsel %vm193, %v188, %v192
        %v195 = vmul.f32 %v187, %v194
        %197 = vrot.lane.b32.xlu0 %v195, 3
        %v198 = vpop.permute.xlu0 %197
        %vm200 = vcmask 147480
        %201 = vst.msk [vmem:[#allocation2] sm:$0x1] %vm200, %v198
        %v202 = vsel %vm180, %v175, -inf
        %v203 = vrot.slane %v202, 4
        %v204 = vmax.f32 %v202, %v203
        %v205 = vrot.slane %v204, 2
        %v206 = vmax.f32 %v204, %v205
        %v207 = vrot.slane %v206, 1
        %v208 = vmax.f32 %v206, %v207
        %210 = vrot.lane.b32.xlu0 %v208, 3
        %v211 = vpop.permute.xlu0 %210
        %213 = vst.msk [vmem:[#allocation2 + $0x1] sm:$0x1] %vm200, %v211
        %s214 = sld [smem:[#allocation3 + $0xe]]
        %v215 = vstv %s214
        %s216 = sld [smem:[#allocation3]]
        %v217 = vld [vmem:[#allocation2] sm:$0x1]
        %v218 = vstv %s216
        %v219 = vmul.f32 %v218, %v217
        %v220 = vadd.f32 %v215, %v219
        %s221 = sld [smem:[#allocation3 + $0x7]]
        %v222 = vld [vmem:[#allocation2 + $0x1] sm:$0x1]
        %v223 = vstv %s221
        %v224 = vmul.f32 %v223, %v222
        %v225 = vadd.f32 %v220, %v224
        %s226 = sld [smem:[#allocation3 + $0x1]]
        %v227 = vstv %s226
        %v228 = vmul.f32 %v227, %v217
        %230 = vrot.lane.b32.xlu0 %v228, 127
        %v231 = vpop.permute.xlu0 %230
        %v233 = vadd.f32 %v225, %v231
        %s234 = sld [smem:[#allocation3 + $0x8]]
        %v235 = vstv %s234
        %v236 = vmul.f32 %v235, %v222
        %238 = vrot.lane.b32.xlu0 %v236, 127
        %v239 = vpop.permute.xlu0 %238
        %v241 = vadd.f32 %v233, %v239
        %s242 = sld [smem:[#allocation3 + $0x2]]
        %v243 = vstv %s242
        %v244 = vmul.f32 %v243, %v217
        %246 = vrot.lane.b32.xlu0 %v244, 126
        %v247 = vpop.permute.xlu0 %246
        %v249 = vadd.f32 %v241, %v247
        %s250 = sld [smem:[#allocation3 + $0x9]]
        %v251 = vstv %s250
        %v252 = vmul.f32 %v251, %v222
        %254 = vrot.lane.b32.xlu0 %v252, 126
        %v255 = vpop.permute.xlu0 %254
        %v257 = vadd.f32 %v249, %v255
        %s258 = sld [smem:[#allocation3 + $0x3]]
        %v259 = vstv %s258
        %v260 = vmul.f32 %v259, %v217
        %262 = vrot.lane.b32.xlu0 %v260, 125
        %v263 = vpop.permute.xlu0 %262
        %v265 = vadd.f32 %v257, %v263
        %s266 = sld [smem:[#allocation3 + $0xa]]
        %v267 = vstv %s266
        %v268 = vmul.f32 %v267, %v222
        %270 = vrot.lane.b32.xlu0 %v268, 125
        %v271 = vpop.permute.xlu0 %270
        %v273 = vadd.f32 %v265, %v271
        %s274 = sld [smem:[#allocation3 + $0x4]]
        %v275 = vstv %s274
        %v276 = vmul.f32 %v275, %v217
        %278 = vrot.lane.b32.xlu0 %v276, 124
        %v279 = vpop.permute.xlu0 %278
        %v281 = vadd.f32 %v273, %v279
        %s282 = sld [smem:[#allocation3 + $0xb]]
        %v283 = vstv %s282
        %v284 = vmul.f32 %v283, %v222
        %286 = vrot.lane.b32.xlu0 %v284, 124
        %v287 = vpop.permute.xlu0 %286
        %v289 = vadd.f32 %v281, %v287
        %s290 = sld [smem:[#allocation3 + $0x5]]
        %v291 = vstv %s290
        %v292 = vmul.f32 %v291, %v217
        %294 = vrot.lane.b32.xlu0 %v292, 123
        %v295 = vpop.permute.xlu0 %294
        %v297 = vadd.f32 %v289, %v295
        %s298 = sld [smem:[#allocation3 + $0xc]]
        %v299 = vstv %s298
        %v300 = vmul.f32 %v299, %v222
        %302 = vrot.lane.b32.xlu0 %v300, 123
        %v303 = vpop.permute.xlu0 %302
        %v305 = vadd.f32 %v297, %v303
        %s306 = sld [smem:[#allocation3 + $0x6]]
        %v307 = vstv %s306
        %v308 = vmul.f32 %v307, %v217
        %310 = vrot.lane.b32.xlu0 %v308, 122
        %v311 = vpop.permute.xlu0 %310
        %v313 = vadd.f32 %v305, %v311
        %s314 = sld [smem:[#allocation3 + $0xd]]
        %v315 = vstv %s314
        %v316 = vmul.f32 %v315, %v222
        %318 = vrot.lane.b32.xlu0 %v316, 122
        %v319 = vpop.permute.xlu0 %318
        %v321 = vadd.f32 %v313, %v319
        %v322 = vxor.u32 %v321, 2147483648
        %v323 = vmul.f32 %v322, 1.442695
        %v324 = vpow.pop %v323
        %v325 = vadd.f32 %v324, 1.0
        %v326 = vrcp.pop %v325
        %v327 = vmul.f32 %v325, %v326
        %v328 = vsub.f32 1.0, %v327
        %v329 = vmul.f32 %v326, %v328
        %v330 = vadd.f32 %v326, %v329
        %vm331 = vweird.f32 %v325
        %vm332 = vweird.f32 %v326
        %vm333 = vmor %vm331, %vm332
        %v334 = vsel %vm333, %v326, %v330
        %v335 = vand.u32 2147483647, %v325
        %vm336 = vcmp.eq.f32.partialorder %v335, 8.507059e+37
        %v337 = vand.u32 %v325, 2147483648
        %v338 = vor.u32 1.1754944e-38, %v337
        %v339 = vsel %vm336, %v338, %v334
        %v340 = vmul.f32 1.0, %v339
        %v341 = vperm.slane %v340, 0
        %v342 = vmul.f32 %v175, %v341
        %343 = vst.msk [vmem:[%s174] sm:$0xf] %vm180, %v342
        %s344 = sand.u32 %s75, 1
        %s345 = scalar_lea.sflag [#allocation5], %s344
        %s346 = sand.u32 %s75, 1
        %s347 = smul.addr %s346, 4
        %s348 = scalar_lea.vmem [#allocation8], %s347
        // Predicated region
        $region37: #{tpu_custom_call.1} parent=27 // pred_check
          %p349 = pneg %p85
        $region38: #{tpu_custom_call.1} parent=27 // pred_check_branch
          %351 = sbr.rel (%p349) target = $region40
        $region39: #{tpu_custom_call.1} parent=27 // pred_region
          %353 = vsyncadd %s345, 0
          %s354 = smul.addr %s20, 4
          %s355 = scalar_lea.hbm %s2, %s354
          %s357 = sshll.u32 %s348, 4
          %s358 = int_to_ptr.vmem [resolvable:$true] %s357
          %s359 = sshll.u32 %s355, 4
          %s360 = int_to_ptr.hbm [resolvable:$true] %s359
          %362 = dma.vmem_to_hbm [thread:$0]  %s358, 64, %s360, %s345
        $region40: #{tpu_custom_call.1} parent=27 // pred_fallthru
          _
      $region28: #{tpu_custom_call.1} parent=5 // pred_fallthru
        _
      %p363 = scmp.le.s32.totalorder 2, %s15
      // Predicated region
      $region41: #{tpu_custom_call.1} parent=5 // pred_check
        %p364 = pneg %p363
      $region42: #{tpu_custom_call.1} parent=5 // pred_check_branch
        %366 = sbr.rel (%p364) target = $region44
      $region43: #{tpu_custom_call.1} parent=5 // pred_region
        %s367 = ssub.s32 %s15, 2
        // Predicated region
        $region45: #{tpu_custom_call.1} parent=43 // pred_check
          %p368 = pneg %p91
        $region46: #{tpu_custom_call.1} parent=43 // pred_check_branch
          %370 = sbr.rel (%p368) target = $region48
        $region47: #{tpu_custom_call.1} parent=43 // pred_region
          %s371 = sand.u32 %s76, 1
          %s372 = scalar_lea.sflag [#allocation5], %s371
          %s373 = sand.u32 %s76, 1
          %s374 = smul.addr %s373, 4
          %s375 = scalar_lea.vmem [#allocation8], %s374
          %377 = dma.done %s372, 64
        $region48: #{tpu_custom_call.1} parent=43 // pred_fallthru
          _
      $region44: #{tpu_custom_call.1} parent=5 // pred_fallthru
        _
    $region6: #{tpu_custom_call.1} parent=1 // loop_footer
      %s19 = sadd.s32 1, %s15
    $region7: #{tpu_custom_call.1} parent=1 // loop_footer_branch
      %14 = sbr.rel target = $region3
    $region8: #{tpu_custom_call.1} parent=1 // loop_exit
      _
    %378 = vsyncpa [#allocation4], 1
    %s379 = scalar_lea.sflag [#allocation4], 1
    %380 = vsyncpa %s379, 1
    %381 = vsyncpa [#allocation5], 1
    %s382 = scalar_lea.sflag [#allocation5], 1
    %383 = vsyncpa %s382, 1
    %384 = vsyncpa [#allocation6], 1
    %s385 = scalar_lea.sflag [#allocation6], 1
    %386 = vsyncpa %s385, 1

</llo_original>
